<compile_context>
chip_gen: v6e
topology: v6e:2x2x1
jax: 0.10.0
libtpu: 0.0.40
codegen_flags: <defaults>
</compile_context>

<pallas_src>
import functools

import jax
import jax.numpy as jnp
from jax.experimental import pallas as pl
from jax.experimental.pallas import tpu as pltpu


# ----------------------------- helpers ---------------------------------------


def _rmsnorm(x, w, eps):
    # F.rms_norm: x * rsqrt(mean(x^2, -1) + eps) * weight
    ms = jnp.mean(x * x, axis=-1, keepdims=True)
    return x * jax.lax.rsqrt(ms + eps) * w


def _full_spec(a):
    nd = a.ndim
    return pl.BlockSpec(a.shape, lambda b, i, _nd=nd: (0,) * _nd)


def _pick_tile(S, target):
    for t in (target, 512, 256, 128, 64, 32, 16, 8):
        if t is None:
            continue
        if t <= S and S % t == 0 and (t % 8 == 0 or t == S):
            return t
    return S


# ----------------------------- kernel 1: latent KV ----------------------------


def kv_proj_kernel(h_ref, wkv_a_wt_ref, wkv_a_b_ref, kv_norm_w_ref, kvn_ref,
                   *, norm_eps):
    h = h_ref[0].astype(jnp.bfloat16)                      # (TKV, d_model)
    kv = jnp.dot(h, wkv_a_wt_ref[...], preferred_element_type=jnp.float32)
    kv = kv + wkv_a_b_ref[...]
    kvn = _rmsnorm(kv, kv_norm_w_ref[...], norm_eps)       # fp32 norm
    kvn_ref[0] = kvn.astype(kvn_ref.dtype)                 # bf16 latent cache


# ----------------------------- kernel 2: attention ----------------------------


def mla_attn_kernel(h_ref,        # (1, TQ, d_model) f32
                    kvn_ref,      # (1, S, C)        bf16 latent cache (this batch)
                    kvn_t_ref,    # (1, C, S)        bf16 pre-transposed cache
                    wq_a_wt_ref,  # (d_model, Lq)    bf16
                    wq_a_b_ref,   # (1, Lq)          f32
                    q_norm_w_ref, # (1, Lq)          f32
                    w_qkv_ref,    # (Lq, H*C)        bf16  (wq_b ∘ Wk, scale folded)
                    b_qkv_ref,    # (1, H*C)         f32
                    w_ov_ref,     # (H*C, d_model)   bf16  (Wv ∘ wo)
                    wo_b_ref,     # (1, d_model)     f32
                    o_ref,        # (1, TQ, d_model) f32
                    *, n_heads, d_latent_kv, tq, norm_eps):
    qi = pl.program_id(1)
    C = d_latent_kv
    d_model = o_ref.shape[-1]

    # --- query path: wq_b(q_norm(wq_a(h))) absorbed into one fused matmul ------
    h = h_ref[0].astype(jnp.bfloat16)                          # (TQ, d_model)
    qa = jnp.dot(h, wq_a_wt_ref[...], preferred_element_type=jnp.float32)
    qa = qa + wq_a_b_ref[...]
    qn = _rmsnorm(qa, q_norm_w_ref[...], norm_eps)             # fp32
    q_kv = jnp.dot(qn.astype(jnp.bfloat16), w_qkv_ref[...],
                   preferred_element_type=jnp.float32)
    q_kv = q_kv + b_qkv_ref[...]                               # (TQ, H*C), scale folded

    # --- latent cache (start_pos == 0 -> cache == kv_norm(kv)) -----------------
    kvn = kvn_ref[0]                                           # (S, C) bf16
    kvn_t = kvn_t_ref[0]                                       # (C, S) bf16
    S = kvn.shape[0]

    # --- in-kernel causal mask for this query tile -----------------------------
    row = qi * tq + jax.lax.broadcasted_iota(jnp.int32, (tq, S), 0)
    col = jax.lax.broadcasted_iota(jnp.int32, (tq, S), 1)
    mask_add = jnp.where(col <= row, 0.0, -1e30).astype(jnp.float32)

    # --- per-head latent attention, accumulate output per head -----------------
    o_acc = jnp.zeros((tq, d_model), jnp.float32)
    for hh in range(n_heads):                                  # static unroll
        q_kv_h = q_kv[:, hh * C:(hh + 1) * C].astype(jnp.bfloat16)      # (TQ, C)
        scores = jnp.dot(q_kv_h, kvn_t,
                         preferred_element_type=jnp.float32)            # (TQ, S)
        scores = scores + mask_add
        # softmax along keys (stand-in for ScalableSoftmax, see header note)
        m = jnp.max(scores, axis=-1, keepdims=True)
        p = jnp.exp(scores - m)
        p = p * pl.reciprocal(jnp.sum(p, axis=-1, keepdims=True), approx=True)
        v_lat = jnp.dot(p.astype(jnp.bfloat16), kvn,
                        preferred_element_type=jnp.float32)              # (TQ, C)
        o_acc = o_acc + jnp.dot(v_lat.astype(jnp.bfloat16),
                                w_ov_ref[hh * C:(hh + 1) * C, :],
                                preferred_element_type=jnp.float32)      # (TQ, d_model)

    o_ref[0] = (o_acc + wo_b_ref[...]).astype(o_ref.dtype)


# ----------------------------- host-side weight prep ---------------------------


def prepare_mla_params(params, *, n_heads, d_head_qk, d_head_v):
    """Pre-transpose / pre-fuse weights (one-time host cost)."""
    d_latent_q = params["wq_a_w"].shape[0]
    d_latent_kv = params["wkv_a_w"].shape[0]
    d_model = params["wo_w"].shape[0]
    scale = d_head_qk ** (-0.5)

    wkv_b = params["wkv_b_w"].reshape(n_heads, d_head_qk + d_head_v, d_latent_kv)
    wk = wkv_b[:, :d_head_qk, :]                    # (H, Dqk, C)
    wv = wkv_b[:, d_head_qk:, :]                    # (H, Dv,  C)

    wq_b_w = params["wq_b_w"].reshape(n_heads, d_head_qk, d_latent_q)
    wq_b_b = params["wq_b_b"].reshape(n_heads, d_head_qk)

    # q_kv = qn @ W_qkv + b_qkv  (wq_b and per-head K-projection fused, scale folded)
    w_qkv = (jnp.einsum("hql,hqc->lhc", wq_b_w, wk) * scale)
    w_qkv = w_qkv.reshape(d_latent_q, n_heads * d_latent_kv)
    b_qkv = (jnp.einsum("hq,hqc->hc", wq_b_b, wk) * scale)
    b_qkv = b_qkv.reshape(1, n_heads * d_latent_kv)

    # o += v_lat_h @ W_ov_h  (per-head V-projection fused with output projection)
    wo_r = params["wo_w"].reshape(d_model, n_heads, d_head_v)
    w_ov = jnp.einsum("hvc,dhv->hcd", wv, wo_r).reshape(n_heads * d_latent_kv, d_model)

    return {
        "wq_a_wt":  params["wq_a_w"].T.astype(jnp.bfloat16),     # (d_model, Lq)
        "wq_a_b":   params["wq_a_b"].astype(jnp.float32),
        "q_norm_w": params["q_norm_w"].astype(jnp.float32),
        "w_qkv":    w_qkv.astype(jnp.bfloat16),
        "b_qkv":    b_qkv.astype(jnp.float32),
        "wkv_a_wt": params["wkv_a_w"].T.astype(jnp.bfloat16),    # (d_model, C)
        "wkv_a_b":  params["wkv_a_b"].astype(jnp.float32),
        "kv_norm_w": params["kv_norm_w"].astype(jnp.float32),
        "w_ov":     w_ov.astype(jnp.bfloat16),
        "wo_b":     params["wo_b"].astype(jnp.float32),
    }


# ----------------------------- wrapper ----------------------------------------


def mla_forward(h, prepared, *, n_heads, d_latent_kv, norm_eps=1e-6,
                tq=None, tkv=None):
    B, S, d_model = h.shape
    C = d_latent_kv

    tq = _pick_tile(S, tq if tq is not None else 256)
    tkv = _pick_tile(S, tkv if tkv is not None else 512)

    vmem_cap = 48 * 1024 * 1024   # fits v5e/v6e (128 MiB) and v7x (64 MiB) VMEM

    # ---- kernel 1: latent KV cache (bf16) -------------------------------------
    kvn = pl.pallas_call(
        functools.partial(kv_proj_kernel, norm_eps=norm_eps),
        out_shape=jax.ShapeDtypeStruct((B, S, C), jnp.bfloat16),
        grid=(B, S // tkv),
        in_specs=[
            pl.BlockSpec((1, tkv, d_model), lambda b, i: (b, i, 0)),
            _full_spec(prepared["wkv_a_wt"]),
            _full_spec(prepared["wkv_a_b"]),
            _full_spec(prepared["kv_norm_w"]),
        ],
        out_specs=pl.BlockSpec((1, tkv, C), lambda b, i: (b, i, 0)),
        compiler_params=pltpu.CompilerParams(
            dimension_semantics=("parallel", "parallel"),
            vmem_limit_bytes=vmem_cap),
    )(h, prepared["wkv_a_wt"], prepared["wkv_a_b"], prepared["kv_norm_w"])

    # Pre-transposed latent cache (tiny: B*S*C bf16).  Done once by XLA so the
    # attention kernel never pays a per-query-tile in-kernel transpose.
    kvn_t = jnp.swapaxes(kvn, 1, 2)

    # ---- kernel 2: query-tiled latent attention --------------------------------
    kernel = functools.partial(
        mla_attn_kernel,
        n_heads=n_heads, d_latent_kv=C, tq=tq, norm_eps=norm_eps)

    out = pl.pallas_call(
        kernel,
        out_shape=jax.ShapeDtypeStruct((B, S, d_model), jnp.float32),
        grid=(B, S // tq),
        in_specs=[
            pl.BlockSpec((1, tq, d_model), lambda b, qi: (b, qi, 0)),   # h tile
            pl.BlockSpec((1, S, C), lambda b, qi: (b, 0, 0)),           # latent cache
            pl.BlockSpec((1, C, S), lambda b, qi: (b, 0, 0)),           # cache^T
            _full_spec(prepared["wq_a_wt"]),
            _full_spec(prepared["wq_a_b"]),
            _full_spec(prepared["q_norm_w"]),
            _full_spec(prepared["w_qkv"]),
            _full_spec(prepared["b_qkv"]),
            _full_spec(prepared["w_ov"]),
            _full_spec(prepared["wo_b"]),
        ],
        out_specs=pl.BlockSpec((1, tq, d_model), lambda b, qi: (b, qi, 0)),
        compiler_params=pltpu.CompilerParams(
            dimension_semantics=("parallel", "parallel"),
            vmem_limit_bytes=vmem_cap),
    )(h, kvn, kvn_t,
      prepared["wq_a_wt"], prepared["wq_a_b"], prepared["q_norm_w"],
      prepared["w_qkv"], prepared["b_qkv"], prepared["w_ov"], prepared["wo_b"])
    return out


# --------------------------- pure-JAX reference --------------------------------


def mla_reference(h, params, *, n_heads, d_head_qk, d_head_v, norm_eps=1e-6):
    B, S, d_model = h.shape
    d_latent_kv = params["wkv_a_w"].shape[0]

    causal = jnp.tril(jnp.ones((S, S), dtype=bool))
    mask = jnp.where(causal, 0.0, -1e30).astype(jnp.float32)

    qa = h @ params["wq_a_w"].T + params["wq_a_b"]
    qa = _rmsnorm(qa, params["q_norm_w"], norm_eps)
    q = qa @ params["wq_b_w"].T + params["wq_b_b"]
    q = q.reshape(B, S, n_heads, d_head_qk)

    kv = h @ params["wkv_a_w"].T + params["wkv_a_b"]
    kvn = _rmsnorm(kv, params["kv_norm_w"], norm_eps)                 # (B, S, C)

    wkv_b = params["wkv_b_w"].reshape(n_heads, d_head_qk + d_head_v, d_latent_kv)
    q_kv = jnp.einsum("bshq,hqc->bshc", q, wkv_b[:, :d_head_qk])
    scores = jnp.einsum("bshc,btc->bsht", q_kv, kvn) * (d_head_qk ** -0.5)
    scores = scores + mask[None, :, None, :]
    scores = jax.nn.softmax(scores, axis=-1)
    v_lat = jnp.einsum("bsht,btc->bshc", scores, kvn)
    v = jnp.einsum("bshc,hvc->bshv", v_lat, wkv_b[:, -d_head_v:])
    o = v.reshape(B, S, n_heads * d_head_v) @ params["wo_w"].T + params["wo_b"]
    return o


# ----------------------------- main --------------------------------------------


if __name__ == "__main__":
    # Small config consistent with ModelArgs structure.
    d_model = 32
    n_heads = 4
    d_head_v = 8
    d_nope_head = 4
    d_rope_head = 4
    d_head_qk = d_nope_head + d_rope_head   # 8
    d_latent_kv = 16
    d_latent_q = 16
    B, S = 2, 16
    norm_eps = 1e-6

    key = jax.random.PRNGKey(0)
    ks = jax.random.split(key, 12)

    def init_w(k, shape, scale=0.05):
        return (scale * jax.random.normal(k, shape)).astype(jnp.float32)

    params = {
        "wq_a_w":    init_w(ks[0], (d_latent_q, d_model)),
        "wq_a_b":    init_w(ks[1], (1, d_latent_q)),
        "q_norm_w":  jnp.ones((1, d_latent_q), jnp.float32),
        "wq_b_w":    init_w(ks[2], (n_heads * d_head_qk, d_latent_q)),
        "wq_b_b":    init_w(ks[3], (1, n_heads * d_head_qk)),
        "wkv_a_w":   init_w(ks[4], (d_latent_kv, d_model)),
        "wkv_a_b":   init_w(ks[5], (1, d_latent_kv)),
        "kv_norm_w": jnp.ones((1, d_latent_kv), jnp.float32),
        "wkv_b_w":   init_w(ks[6], (n_heads * (d_head_qk + d_head_v), d_latent_kv)),
        "wo_w":      init_w(ks[7], (d_model, n_heads * d_head_v)),
        "wo_b":      init_w(ks[8], (1, d_model)),
    }

    h = jax.random.normal(ks[9], (B, S, d_model), dtype=jnp.float32)

    prepared = prepare_mla_params(params, n_heads=n_heads,
                                  d_head_qk=d_head_qk, d_head_v=d_head_v)

    # tq=8 forces two query tiles per batch element so cross-tile causal masking
    # is exercised even at this tiny sequence length.
    out = mla_forward(h, prepared, n_heads=n_heads, d_latent_kv=d_latent_kv,
                      norm_eps=norm_eps, tq=8, tkv=8)
    out = jax.block_until_ready(out)

    ref = mla_reference(h, params, n_heads=n_heads, d_head_qk=d_head_qk,
                        d_head_v=d_head_v, norm_eps=norm_eps)
    ref = jax.block_until_ready(ref)

    assert out.shape == (B, S, d_model)
    # bf16 MXU operands + fused weights + approx reciprocal -> loosened tolerance
    # vs. the fp32 reference.
    if not jnp.allclose(out, ref, rtol=2e-2, atol=4e-3):
        max_err = float(jnp.max(jnp.abs(out - ref)))
        raise AssertionError(
            f"Pallas output does not match JAX reference (max abs err={max_err})")

    print("KERNEL_OK")
</pallas_src>

<mosaic_0001>
module attributes {stable_mosaic.version = 11 : i64} {
  func.func @kv_proj_kernel(%arg0: i32, %arg1: i32, %arg2: memref<1x8x32xf32, #tpu.memory_space<vmem>>, %arg3: memref<32x16xbf16, #tpu.memory_space<vmem>>, %arg4: memref<1x16xf32, #tpu.memory_space<vmem>>, %arg5: memref<1x16xf32, #tpu.memory_space<vmem>>, %arg6: memref<1x8x16xbf16, #tpu.memory_space<vmem>>) attributes {dimension_semantics = [#tpu.dimension_semantics<parallel>, #tpu.dimension_semantics<parallel>], iteration_bounds = array<i64: 2, 2>, scalar_prefetch = 0 : i64, scratch_operands = 0 : i64, tpu.core_type = #tpu.core_type<tc>, window_params = [{transform_indices = @transform_0, window_bounds = array<i64: 1, 8, 32>}, {pipeline_mode = #tpu.pipeline_mode<synchronous>, transform_indices = @transform_1, window_bounds = array<i64: 32, 16>}, {pipeline_mode = #tpu.pipeline_mode<synchronous>, transform_indices = @transform_2, window_bounds = array<i64: 1, 16>}, {pipeline_mode = #tpu.pipeline_mode<synchronous>, transform_indices = @transform_3, window_bounds = array<i64: 1, 16>}, {transform_indices = @transform_4, window_bounds = array<i64: 1, 8, 16>}]} {
    %c0 = arith.constant 0 : index
    %c0_0 = arith.constant 0 : index
    %c0_1 = arith.constant 0 : index
    %0 = vector.load %arg2[%c0, %c0_0, %c0_1] : memref<1x8x32xf32, #tpu.memory_space<vmem>>, vector<1x8x32xf32>
    %1 = vector.shape_cast %0 : vector<1x8x32xf32> to vector<8x32xf32>
    %2 = arith.truncf %1 : vector<8x32xf32> to vector<8x32xbf16>
    %c0_2 = arith.constant 0 : index
    %c0_3 = arith.constant 0 : index
    %3 = vector.load %arg3[%c0_2, %c0_3] : memref<32x16xbf16, #tpu.memory_space<vmem>>, vector<32x16xbf16>
    %cst = arith.constant dense<0.000000e+00> : vector<8x16xf32>
    %4 = tpu.matmul %2, %3, %cst {dimension_numbers = #tpu.dot_dimension_numbers<[1], [0], [0], [1], [0, 0, 1, 1], [], []>} : vector<8x32xbf16>, vector<32x16xbf16>, vector<8x16xf32> -> vector<8x16xf32>
    %c0_4 = arith.constant 0 : index
    %c0_5 = arith.constant 0 : index
    %5 = vector.load %arg4[%c0_4, %c0_5] : memref<1x16xf32, #tpu.memory_space<vmem>>, vector<1x16xf32>
    %6 = vector.broadcast %5 : vector<1x16xf32> to vector<8x16xf32>
    %7 = arith.addf %4, %6 : vector<8x16xf32>
    %c0_6 = arith.constant 0 : index
    %c0_7 = arith.constant 0 : index
    %8 = vector.load %arg5[%c0_6, %c0_7] : memref<1x16xf32, #tpu.memory_space<vmem>>, vector<1x16xf32>
    %9 = arith.mulf %7, %7 : vector<8x16xf32>
    %cst_8 = arith.constant dense<0.000000e+00> : vector<8xf32>
    %10 = vector.multi_reduction <add>, %9, %cst_8 [1] : vector<8x16xf32> to vector<8xf32>
    %11 = vector.shape_cast %10 : vector<8xf32> to vector<8x1xf32>
    %cst_9 = arith.constant 1.600000e+01 : f32
    %12 = vector.broadcast %cst_9 : f32 to vector<8x1xf32>
    %13 = arith.divf %11, %12 : vector<8x1xf32>
    %cst_10 = arith.constant 9.99999997E-7 : f32
    %14 = vector.broadcast %cst_10 : f32 to vector<8x1xf32>
    %15 = arith.addf %13, %14 : vector<8x1xf32>
    %16 = math.rsqrt %15 : vector<8x1xf32>
    %17 = vector.broadcast %16 : vector<8x1xf32> to vector<8x16xf32>
    %18 = arith.mulf %7, %17 : vector<8x16xf32>
    %19 = vector.broadcast %8 : vector<1x16xf32> to vector<8x16xf32>
    %20 = arith.mulf %18, %19 : vector<8x16xf32>
    %21 = arith.truncf %20 : vector<8x16xf32> to vector<8x16xbf16>
    %c0_11 = arith.constant 0 : index
    %c0_12 = arith.constant 0 : index
    %c0_13 = arith.constant 0 : index
    %22 = vector.load %arg6[%c0_11, %c0_12, %c0_13] : memref<1x8x16xbf16, #tpu.memory_space<vmem>>, vector<1x8x16xbf16>
    %23 = vector.shape_cast %22 : vector<1x8x16xbf16> to vector<8x16xbf16>
    %24 = vector.shape_cast %21 : vector<8x16xbf16> to vector<1x8x16xbf16>
    tpu.vector_store %arg6[%c0_11, %c0_12, %c0_13], %24 {strides = array<i32>} : memref<1x8x16xbf16, #tpu.memory_space<vmem>>, vector<1x8x16xbf16>,
    return
  }
  func.func @transform_0(%arg0: i32, %arg1: i32) -> (i32, i32, i32) {
    %c0_i32 = arith.constant 0 : i32
    %c0_i32_0 = arith.constant 0 : i32
    return %arg0, %arg1, %c0_i32 : i32, i32, i32
  }
  func.func @transform_1(%arg0: i32, %arg1: i32) -> (i32, i32) {
    %c0_i32 = arith.constant 0 : i32
    %c0_i32_0 = arith.constant 0 : i32
    %c0_i32_1 = arith.constant 0 : i32
    return %c0_i32, %c0_i32_0 : i32, i32
  }
  func.func @transform_2(%arg0: i32, %arg1: i32) -> (i32, i32) {
    %c0_i32 = arith.constant 0 : i32
    %c0_i32_0 = arith.constant 0 : i32
    %c0_i32_1 = arith.constant 0 : i32
    return %c0_i32, %c0_i32_0 : i32, i32
  }
  func.func @transform_3(%arg0: i32, %arg1: i32) -> (i32, i32) {
    %c0_i32 = arith.constant 0 : i32
    %c0_i32_0 = arith.constant 0 : i32
    %c0_i32_1 = arith.constant 0 : i32
    return %c0_i32, %c0_i32_0 : i32, i32
  }
  func.func @transform_4(%arg0: i32, %arg1: i32) -> (i32, i32, i32) {
    %c0_i32 = arith.constant 0 : i32
    %c0_i32_0 = arith.constant 0 : i32
    return %arg0, %arg1, %c0_i32 : i32, i32, i32
  }
}

</mosaic_0001>

<llo_original>
// kernel: tpu_custom_call.1
$region0: #{tpu_custom_call.1}
  #allocation0 [shape = 'u32[]', space=smem, size = 0x4, offset = 0x4, fixed_abs, tag = 'smem constant byte address 0x4 - core index']
  #allocation1 [shape = 'u32[144,128]{1,0:T(1,128)}', space=vmem, size = 0x12000, scoped, tag = 'internal scratch']
  %s0 = inlined_call_operand.hbm [shape: f32[2,16,32], index: 0, kind: input, shape index: {}]
  %s1 = inlined_call_operand.vmem [shape: bf16[32,16], index: 1, kind: input, shape index: {}]
  %s2 = inlined_call_operand.vmem [shape: f32[1,16], index: 2, kind: input, shape index: {}]
  %s3 = inlined_call_operand.vmem [shape: f32[1,16], index: 3, kind: input, shape index: {}]
  %s4 = inlined_call_operand.hbm [shape: bf16[2,16,16], index: 4, kind: output, shape index: {}]
  %s5 = sld [smem:[#allocation0]]
  $region53: #{tpu_custom_call.1} parent=0
    _
  %s7 = ssub.s32 1, %s5
  %s8 = scalar_select 0, %s7, %s5
  $region1: #{tpu_custom_call.1} parent=0
    #allocation2 [shape = 'u8[8192]{0}', space=vmem, size = 0x2000, scoped, tag = 'input window, operand 0']
    #allocation3 [shape = 's32[2]{0}', space=sflag, size = 0x8, scoped, tag = 'scoped memory for tpu_custom_call.1']
    #allocation4 [shape = 's32[2]{0}', space=sflag, size = 0x8, scoped, tag = 'scoped memory for tpu_custom_call.1']
    #allocation5 [shape = 'u8[4096]{0}', space=vmem, size = 0x1000, scoped, tag = 'output window, operand 0']
    %9 = vsyncpa [#allocation3], 0
    %s10 = scalar_lea.sflag [#allocation3], 1
    %11 = vsyncpa %s10, 0
    %12 = vsyncpa [#allocation4], 0
    %s13 = scalar_lea.sflag [#allocation4], 1
    %14 = vsyncpa %s13, 0
    loop: start=0, step=1, limit=6
    $region2: #{tpu_custom_call.1} parent=1 // loop_pre_header
      _
    $region3: #{tpu_custom_call.1} parent=1 // loop_header
      %s16 = sphi 0, %s20
      %p17 = scmp.ge.s32.totalorder %s16, 6
      %s23 = sphi 0, %s35
      %s24 = sphi 0, %s31
      %s25 = sphi 0, %s23
      %s26 = sphi 0, %s24
      %s27 = sphi 0, %s25
      %s28 = sphi 0, %s26
      %s40 = sphi 0, %s42
      %s43 = sphi 0, %s40
      %s44 = sphi 0, %s43
      %s60 = sphi 0, %s44
      %s64 = sphi 0, %s64
      %s66 = sphi 0, %s64
      %s67 = sphi 0, %s66
      %s81 = sphi 0, %s67
      %s85 = sphi 0, %s85
      %s87 = sphi 0, %s85
      %s88 = sphi 0, %s87
      %s102 = sphi 0, %s88
      %s106 = sphi 0, %s106
      %s108 = sphi 0, %s106
      %s109 = sphi 0, %s108
      %s123 = sphi 0, %s109
      %s131 = sphi 0, %s133
      %s134 = sphi 0, %s131
      %s135 = sphi 0, %s134
      %s151 = sphi 0, %s135
    $region4: #{tpu_custom_call.1} parent=1 // loop_header_branch
      %19 = sbr.rel (%p17) target = $region8
    $region5: #{tpu_custom_call.1} parent=1 // loop_body
      %s21 = ssub.s32 %s16, 1
      %s22 = ssub.s32 %s16, 2
      %s29 = sadd.s32 1, %s24
      %p30 = scmp.ge.s32.totalorder %s29, 2
      %s31 = scalar_select %p30, 0, %s29
      %s32 = sadd.s32 1, %s23
      %s33 = scalar_select %p30, %s32, %s23
      %p34 = scmp.ge.s32.totalorder %s33, 2
      %s35 = scalar_select %p34, 0, %s33
      %s36 = ssub.s32 %s23, %s35
      %s37 = ssub.s32 %s24, %s31
      %s38 = sor.u32 %s36, %s37
      %p39 = scmp.eq.s32.totalorder %s38, 0
      %s41 = sadd.s32 %s40, 1
      %s42 = scalar_select %p39, %s40, %s41
      %p45 = pneg %p39
      %p46 = scmp.eq.s32.totalorder %s16, 3
      %p47 = por %p45, %p46
      %p48 = scmp.ne.s32.totalorder %s40, %s43
      %p49 = scmp.eq.s32.totalorder %s16, 0
      %p50 = por %p48, %p49
      %p51 = scmp.ne.s32.totalorder %s40, %s43
      %p52 = scmp.eq.s32.totalorder %s21, 3
      %p53 = por %p51, %p52
      %p54 = scmp.ne.s32.totalorder %s43, %s44
      %p55 = scmp.eq.s32.totalorder %s21, 0
      %p56 = por %p54, %p55
      %p57 = scmp.ne.s32.totalorder %s43, %s44
      %p58 = scmp.eq.s32.totalorder %s22, 3
      %p59 = por %p57, %p58
      %p61 = scmp.ne.s32.totalorder %s44, %s60
      %p62 = scmp.eq.s32.totalorder %s22, 0
      %p63 = por %p61, %p62
      %s65 = sadd.s32 %s64, 1
      %p68 = scmp.eq.s32.totalorder %s16, 3
      %p69 = scmp.ne.s32.totalorder %s64, %s66
      %p70 = scmp.eq.s32.totalorder %s16, 0
      %p71 = por %p69, %p70
      %p72 = scmp.ne.s32.totalorder %s64, %s66
      %p73 = scmp.eq.s32.totalorder %s21, 3
      %p74 = por %p72, %p73
      %p75 = scmp.ne.s32.totalorder %s66, %s67
      %p76 = scmp.eq.s32.totalorder %s21, 0
      %p77 = por %p75, %p76
      %p78 = scmp.ne.s32.totalorder %s66, %s67
      %p79 = scmp.eq.s32.totalorder %s22, 3
      %p80 = por %p78, %p79
      %p82 = scmp.ne.s32.totalorder %s67, %s81
      %p83 = scmp.eq.s32.totalorder %s22, 0
      %p84 = por %p82, %p83
      %s86 = sadd.s32 %s85, 1
      %p89 = scmp.eq.s32.totalorder %s16, 3
      %p90 = scmp.ne.s32.totalorder %s85, %s87
      %p91 = scmp.eq.s32.totalorder %s16, 0
      %p92 = por %p90, %p91
      %p93 = scmp.ne.s32.totalorder %s85, %s87
      %p94 = scmp.eq.s32.totalorder %s21, 3
      %p95 = por %p93, %p94
      %p96 = scmp.ne.s32.totalorder %s87, %s88
      %p97 = scmp.eq.s32.totalorder %s21, 0
      %p98 = por %p96, %p97
      %p99 = scmp.ne.s32.totalorder %s87, %s88
      %p100 = scmp.eq.s32.totalorder %s22, 3
      %p101 = por %p99, %p100
      %p103 = scmp.ne.s32.totalorder %s88, %s102
      %p104 = scmp.eq.s32.totalorder %s22, 0
      %p105 = por %p103, %p104
      %s107 = sadd.s32 %s106, 1
      %p110 = scmp.eq.s32.totalorder %s16, 3
      %p111 = scmp.ne.s32.totalorder %s106, %s108
      %p112 = scmp.eq.s32.totalorder %s16, 0
      %p113 = por %p111, %p112
      %p114 = scmp.ne.s32.totalorder %s106, %s108
      %p115 = scmp.eq.s32.totalorder %s21, 3
      %p116 = por %p114, %p115
      %p117 = scmp.ne.s32.totalorder %s108, %s109
      %p118 = scmp.eq.s32.totalorder %s21, 0
      %p119 = por %p117, %p118
      %p120 = scmp.ne.s32.totalorder %s108, %s109
      %p121 = scmp.eq.s32.totalorder %s22, 3
      %p122 = por %p120, %p121
      %p124 = scmp.ne.s32.totalorder %s109, %s123
      %p125 = scmp.eq.s32.totalorder %s22, 0
      %p126 = por %p124, %p125
      %s127 = ssub.s32 %s23, %s35
      %s128 = ssub.s32 %s24, %s31
      %s129 = sor.u32 %s127, %s128
      %p130 = scmp.eq.s32.totalorder %s129, 0
      %s132 = sadd.s32 %s131, 1
      %s133 = scalar_select %p130, %s131, %s132
      %p136 = pneg %p130
      %p137 = scmp.eq.s32.totalorder %s16, 3
      %p138 = por %p136, %p137
      %p139 = scmp.ne.s32.totalorder %s131, %s134
      %p140 = scmp.eq.s32.totalorder %s16, 0
      %p141 = por %p139, %p140
      %p142 = scmp.ne.s32.totalorder %s131, %s134
      %p143 = scmp.eq.s32.totalorder %s21, 3
      %p144 = por %p142, %p143
      %p145 = scmp.ne.s32.totalorder %s134, %s135
      %p146 = scmp.eq.s32.totalorder %s21, 0
      %p147 = por %p145, %p146
      %p148 = scmp.ne.s32.totalorder %s134, %s135
      %p149 = scmp.eq.s32.totalorder %s22, 3
      %p150 = por %p148, %p149
      %p152 = scmp.ne.s32.totalorder %s135, %s151
      %p153 = scmp.eq.s32.totalorder %s22, 0
      %p154 = por %p152, %p153
      %p155 = scmp.le.s32.totalorder 1, %s16
      %p156 = scmp.lt.s32.totalorder %s16, 5
      %p157 = pnand %p155, %p156
      %p158 = pneg %p157
      // Predicated region
      $region9: #{tpu_custom_call.1} parent=5 // pred_check
        _
      $region10: #{tpu_custom_call.1} parent=5 // pred_check_branch
        %160 = sbr.rel (%p157) target = $region12
      $region11: #{tpu_custom_call.1} parent=5 // pred_region
        %s161 = ssub.s32 %s16, 1
        // Predicated region
        $region13: #{tpu_custom_call.1} parent=11 // pred_check
          %p162 = pneg %p77
        $region14: #{tpu_custom_call.1} parent=11 // pred_check_branch
          %164 = sbr.rel (%p162) target = $region16
        $region15: #{tpu_custom_call.1} parent=11 // pred_region
          _
        $region16: #{tpu_custom_call.1} parent=11 // pred_fallthru
          _
        // Predicated region
        $region17: #{tpu_custom_call.1} parent=11 // pred_check
          %p165 = pneg %p98
        $region18: #{tpu_custom_call.1} parent=11 // pred_check_branch
          %167 = sbr.rel (%p165) target = $region20
        $region19: #{tpu_custom_call.1} parent=11 // pred_region
          _
        $region20: #{tpu_custom_call.1} parent=11 // pred_fallthru
          _
        // Predicated region
        $region21: #{tpu_custom_call.1} parent=11 // pred_check
          %p168 = pneg %p119
        $region22: #{tpu_custom_call.1} parent=11 // pred_check_branch
          %170 = sbr.rel (%p168) target = $region24
        $region23: #{tpu_custom_call.1} parent=11 // pred_region
          _
        $region24: #{tpu_custom_call.1} parent=11 // pred_fallthru
          _
      $region12: #{tpu_custom_call.1} parent=5 // pred_fallthru
        _
      %p171 = scmp.lt.s32.totalorder %s16, 4
      // Predicated region
      $region25: #{tpu_custom_call.1} parent=5 // pred_check
        %p172 = pneg %p171
      $region26: #{tpu_custom_call.1} parent=5 // pred_check_branch
        %174 = sbr.rel (%p172) target = $region28
      $region27: #{tpu_custom_call.1} parent=5 // pred_region
        // Predicated region
        $region29: #{tpu_custom_call.1} parent=27 // pred_check
          %p175 = pneg %p50
        $region30: #{tpu_custom_call.1} parent=27 // pred_check_branch
          %177 = sbr.rel (%p175) target = $region32
        $region31: #{tpu_custom_call.1} parent=27 // pred_region
          %s178 = sand.u32 %s40, 1
          %s179 = scalar_lea.sflag [#allocation3], %s178
          %s180 = sand.u32 %s40, 1
          %s181 = smul.addr %s180, 8
          %s182 = scalar_lea.vmem [#allocation2], %s181
          %s184 = ssub.s32 128, 128
          %185 = vsyncadd %s179, %s184
          %s186 = smul.addr %s23, 2
          %s187 = sadd.s32 %s24, %s186
          %s188 = smul.addr %s187, 128
          %s189 = scalar_lea.hbm %s0, %s188
          %s191 = sshll.u32 %s182, 4
          %s192 = int_to_ptr.vmem [resolvable:$true] %s191
          %194 = dma.hbm_to_vmem [thread:$0]  %s189, 128, %s192, %s179
        $region32: #{tpu_custom_call.1} parent=27 // pred_fallthru
          _
      $region28: #{tpu_custom_call.1} parent=5 // pred_fallthru
        _
      %p195 = scmp.le.s32.totalorder 1, %s16
      %p196 = scmp.lt.s32.totalorder %s16, 5
      %p197 = pnand %p195, %p196
      %p198 = pneg %p197
      // Predicated region
      $region33: #{tpu_custom_call.1} parent=5 // pred_check
        _
      $region34: #{tpu_custom_call.1} parent=5 // pred_check_branch
        %200 = sbr.rel (%p197) target = $region36
      $region35: #{tpu_custom_call.1} parent=5 // pred_region
        %s201 = ssub.s32 %s16, 1
        %s202 = sand.u32 %s43, 1
        %s203 = scalar_lea.sflag [#allocation3], %s202
        %s204 = sand.u32 %s43, 1
        %s205 = smul.addr %s204, 8
        %s206 = scalar_lea.vmem [#allocation2], %s205
        // Predicated region
        $region37: #{tpu_custom_call.1} parent=35 // pred_check
          %p207 = pneg %p56
        $region38: #{tpu_custom_call.1} parent=35 // pred_check_branch
          %209 = sbr.rel (%p207) target = $region40
        $region39: #{tpu_custom_call.1} parent=35 // pred_region
          %210 = dma.done %s203, 128
        $region40: #{tpu_custom_call.1} parent=35 // pred_fallthru
          _
        %s211 = sand.u32 %s43, 1
        %s212 = scalar_lea.sflag [#allocation3], %s211
        %s213 = sand.u32 %s43, 1
        %s214 = smul.addr %s213, 8
        %s215 = scalar_lea.vmem [#allocation2], %s214
        %p216 = pneg %p56
        %p217 = pneg %p53
        %p218 = pneg %p77
        %p219 = pneg %p74
        %p220 = pneg %p98
        %p221 = pneg %p95
        %p222 = pneg %p119
        %p223 = pneg %p116
        %p224 = pneg %p147
        %p225 = pneg %p144
        %s226 = sand.u32 %s134, 1
        %s227 = scalar_lea.sflag [#allocation4], %s226
        %s228 = sand.u32 %s134, 1
        %s229 = smul.addr %s228, 4
        %s230 = scalar_lea.vmem [#allocation5], %s229
        %v232 = vld [vmem:[%s206] sm:$0xff]
        %v233 = vpack.c.bf16 %v232, %v232
        %v234 = vld [vmem:[%s1] sm:$0xf]
        %v235 = vld [vmem:[%s1 + $0x4] sm:$0xf]
        %v236 = vld [vmem:[%s1 + $0x8] sm:$0xf]
        %v237 = vld [vmem:[%s1 + $0xc] sm:$0xf]
        %v238 = vld [vmem:[%s2] sm:$0x1]
        %v240 = vlaneseq
        %v241 = vshrl.u32 %v240, 7
        %v242 = vsub.s32 0, %v241
        %v243 = vrot.slane %v238, %v242
        %v249 = vunpack.c.l.b16 %v234
        %v250 = vunpack.c.l.b16 %v235
        %v251 = vunpack.c.l.b16 %v236
        %v252 = vunpack.c.l.b16 %v237
        %v253 = vpack.c.b16 %v250, %v249
        %v254 = vpack.c.b16 %v252, %v251
        %vm257 = vcmask 261120
        %v259 = vsel %vm257, %v233, 0
        %261 = vmatprep.subr.bf16.mxu0 0
        %262 = vmatpush1.bf16.msra.mxu0 0
        %263 = vmatprep.subr.bf16.mxu0 0
        %264 = vmatpush1.bf16.msra.mxu0 0
        %265 = vmatprep.subr.bf16.mxu0 0
        %266 = vmatpush1.bf16.msra.mxu0 0
        %267 = vmatprep.subr.bf16.mxu0 0
        %268 = vmatpush1.bf16.msra.mxu0 0
        %269 = vmatprep.subr.bf16.mxu0 0
        %270 = vmatpush1.bf16.msra.mxu0 0
        %271 = vmatprep.subr.bf16.mxu0 0
        %272 = vmatpush1.bf16.msra.mxu0 0
        %273 = vmatprep.subr.bf16.mxu0 0
        %274 = vmatpush1.bf16.msra.mxu0 %v254
        %275 = vmatprep.subr.bf16.mxu0 0
        %276 = vmatpush1.bf16.msra.mxu0 %v253
        %277 = vmatprep.subr.bf16.mxu0 0
        %278 = vmatpush2.bf16.msra.mxu0 0
        %279 = vmatprep.subr.bf16.mxu0 0
        %280 = vmatpush2.bf16.msra.mxu0 0
        %281 = vmatprep.subr.bf16.mxu0 0
        %282 = vmatpush2.bf16.msra.mxu0 0
        %283 = vmatprep.subr.bf16.mxu0 0
        %284 = vmatpush2.bf16.msra.mxu0 0
        %285 = vmatprep.subr.bf16.mxu0 0
        %286 = vmatpush2.bf16.msra.mxu0 0
        %287 = vmatprep.subr.bf16.mxu0 0
        %288 = vmatpush2.bf16.msra.mxu0 0
        %289 = vmatprep.subr.bf16.mxu0 0
        %290 = vmatpush2.bf16.msra.mxu0 0
        %291 = vmatprep.subr.bf16.mxu0 0
        %292 = vmatpush2.bf16.msra.mxu0 0
        %293 = vmatprep.mubr.bf16.mxu0 0
        %294 = vmatmul.mubr.bf16.gmra.mxu0 %v259
        %v295 = vpop.f32.mrf.mxu0
        %v296 = vadd.f32 %v243, %v295
        %v297 = vpop.f32.mrf.mxu0
        %v298 = vpop.f32.mrf.mxu0
        %v299 = vpop.f32.mrf.mxu0
        %300 = vdwg.mxu0
        %v301 = vld [vmem:[%s3] sm:$0x1]
        %v302 = vmul.f32 %v296, %v296
        %vm303 = vcmask 130048
        %v304 = vsel %vm303, %v302, 0.0
        %305 = vadd.xlane.f32.xlu0 %v304
        %v306 = vpop.xlane.xlu0 %305
        %v307 = vrcp.pop 16.0
        %v308 = vmul.f32 %v306, %v307
        %v309 = vadd.f32 %v308, 1e-06
        %v310 = vrsqrt.pop %v309
        %v311 = vmul.f32 %v296, %v310
        %v313 = vlaneseq
        %v314 = vshrl.u32 %v313, 7
        %v315 = vsub.s32 0, %v314
        %v316 = vrot.slane %v301, %v315
        %v318 = vmul.f32 %v311, %v316
        %v319 = vpack.c.bf16 %v318, %v318
        %vm320 = vcmask 125952
        %321 = vst.msk [vmem:[%s230] sm:$0xf] %vm320, %v319
        %s322 = sand.u32 %s134, 1
        %s323 = scalar_lea.sflag [#allocation4], %s322
        %s324 = sand.u32 %s134, 1
        %s325 = smul.addr %s324, 4
        %s326 = scalar_lea.vmem [#allocation5], %s325
        // Predicated region
        $region41: #{tpu_custom_call.1} parent=35 // pred_check
          %p327 = pneg %p144
        $region42: #{tpu_custom_call.1} parent=35 // pred_check_branch
          %329 = sbr.rel (%p327) target = $region44
        $region43: #{tpu_custom_call.1} parent=35 // pred_region
          %s331 = ssub.s32 64, 64
          %332 = vsyncadd %s323, %s331
          %s333 = smul.addr %s25, 2
          %s334 = sadd.s32 %s26, %s333
          %s335 = smul.addr %s334, 64
          %s336 = scalar_lea.hbm %s4, %s335
          %s338 = sshll.u32 %s326, 4
          %s339 = int_to_ptr.vmem [resolvable:$true] %s338
          %341 = dma.vmem_to_hbm [thread:$0]  %s339, 64, %s336, %s323
        $region44: #{tpu_custom_call.1} parent=35 // pred_fallthru
          _
      $region36: #{tpu_custom_call.1} parent=5 // pred_fallthru
        _
      %p342 = scmp.le.s32.totalorder 2, %s16
      // Predicated region
      $region45: #{tpu_custom_call.1} parent=5 // pred_check
        %p343 = pneg %p342
      $region46: #{tpu_custom_call.1} parent=5 // pred_check_branch
        %345 = sbr.rel (%p343) target = $region48
      $region47: #{tpu_custom_call.1} parent=5 // pred_region
        %s346 = ssub.s32 %s16, 2
        // Predicated region
        $region49: #{tpu_custom_call.1} parent=47 // pred_check
          %p347 = pneg %p150
        $region50: #{tpu_custom_call.1} parent=47 // pred_check_branch
          %349 = sbr.rel (%p347) target = $region52
        $region51: #{tpu_custom_call.1} parent=47 // pred_region
          %s350 = sand.u32 %s135, 1
          %s351 = scalar_lea.sflag [#allocation4], %s350
          %s352 = sand.u32 %s135, 1
          %s353 = smul.addr %s352, 4
          %s354 = scalar_lea.vmem [#allocation5], %s353
          %355 = dma.done %s351, 64
        $region52: #{tpu_custom_call.1} parent=47 // pred_fallthru
          _
      $region48: #{tpu_custom_call.1} parent=5 // pred_fallthru
        _
    $region6: #{tpu_custom_call.1} parent=1 // loop_footer
      %s20 = sadd.s32 1, %s16
    $region7: #{tpu_custom_call.1} parent=1 // loop_footer_branch
      %15 = sbr.rel target = $region3
    $region8: #{tpu_custom_call.1} parent=1 // loop_exit
      _
    %356 = vsyncpa [#allocation3], 1
    %s357 = scalar_lea.sflag [#allocation3], 1
    %358 = vsyncpa %s357, 1
    %359 = vsyncpa [#allocation4], 1
    %s360 = scalar_lea.sflag [#allocation4], 1
    %361 = vsyncpa %s360, 1

</llo_original>
